<compile_context>
chip_gen: v7x
topology: tpu7x:2x2x1
jax: 0.10.0
libtpu: 0.0.40
codegen_flags: <defaults>
</compile_context>

<pallas_src>
import functools
import math

import jax
import jax.numpy as jnp
from jax import lax
from jax.experimental import pallas as pl
from jax.experimental.pallas import tpu as pltpu

# 48 MiB leaves headroom on v7x (64 MiB physical) and is well under v5e/v6e
# (128 MiB physical).
_VMEM_LIMIT = 48 * 1024 * 1024


def _round_up(x, m):
    return ((x + m - 1) // m) * m


def _pick_tile(dim, pref, align):
    """Largest tile <= pref that is a multiple of `align` and divides dim."""
    if dim <= pref:
        return dim
    t = (pref // align) * align
    while t >= align:
        if dim % t == 0:
            return t
        t -= align
    # TODO(synk): dims that are not a multiple of `align` fall back to the
    # full extent; a cdiv grid with masked edges would bound VMEM here too.
    return dim


# ----------------------------------------------------------------------------
# Tiled linear:  y = x @ W + b   (bf16 MXU operands, f32 accumulation)
#   x: (M, K), W: (K, N), b: (1, N)  -> y: (M, N)
# ----------------------------------------------------------------------------
def _linear_kernel(x_ref, w_ref, b_ref, o_ref, acc_ref):
    kk = pl.program_id(2)

    @pl.when(kk == 0)
    def _():
        acc_ref[...] = jnp.zeros_like(acc_ref)

    acc_ref[...] += jnp.dot(
        x_ref[...].astype(jnp.bfloat16),
        w_ref[...].astype(jnp.bfloat16),
        preferred_element_type=jnp.float32,
    )

    @pl.when(kk == pl.num_programs(2) - 1)
    def _():
        o_ref[...] = (acc_ref[...] + b_ref[...]).astype(o_ref.dtype)


def pallas_linear(x2d, w, b, *, tm_pref=512, tn_pref=512, tk_pref=512):
    m, k_dim = x2d.shape
    n = w.shape[1]
    # Bounded M tiling: pad ragged M instead of falling back to full extent.
    tm = min(tm_pref, _round_up(m, 8))
    m_pad = _round_up(m, tm)
    if m_pad != m:
        x2d = jnp.pad(x2d, ((0, m_pad - m), (0, 0)))
    tn = _pick_tile(n, tn_pref, 128)
    tk = _pick_tile(k_dim, tk_pref, 128)
    grid = (m_pad // tm, n // tn, k_dim // tk)

    out = pl.pallas_call(
        _linear_kernel,
        out_shape=jax.ShapeDtypeStruct((m_pad, n), jnp.float32),
        grid_spec=pltpu.PrefetchScalarGridSpec(
            num_scalar_prefetch=0,
            grid=grid,
            in_specs=[
                pl.BlockSpec((tm, tk), lambda i, j, kk: (i, kk)),
                pl.BlockSpec((tk, tn), lambda i, j, kk: (kk, j)),
                pl.BlockSpec((1, tn), lambda i, j, kk: (0, j)),
            ],
            out_specs=pl.BlockSpec((tm, tn), lambda i, j, kk: (i, j)),
            scratch_shapes=[pltpu.VMEM((tm, tn), jnp.float32)],
        ),
        compiler_params=pltpu.CompilerParams(
            dimension_semantics=("parallel", "parallel", "arbitrary"),
            vmem_limit_bytes=_VMEM_LIMIT,
        ),
    )(x2d, w, b.reshape(1, n))
    return out[:m] if m_pad != m else out


# ----------------------------------------------------------------------------
# Attention core with fused output projection.
#   Grid: (B, Sq_tiles, H); per step processes one (b, q-block, head).
#   q/k/v: (B, H, S, Dh).  o_w: (H, Dh, E), o_b: (1, E).
#   Outputs: attn (B, H, Sq, Sk) f32, out (B, Sq, E) f32.
#   The head axis is a reduction for `out`: acc_ref accumulates ctx_h @ o_w_h.
# ----------------------------------------------------------------------------
def _attn_kernel(q_ref, k_ref, v_ref, ow_ref, ob_ref, *rest, scale, has_bias):
    if has_bias:
        bias_ref, attn_ref, out_ref, acc_ref = rest
    else:
        attn_ref, out_ref, acc_ref = rest
        bias_ref = None

    h = pl.program_id(2)

    @pl.when(h == 0)
    def _():
        acc_ref[...] = jnp.zeros_like(acc_ref)

    # Scale Q once per (tq, Dh) tile (cheaper than scaling the (tq, Sk) scores).
    q = (q_ref[0, 0] * scale).astype(jnp.bfloat16)
    k = k_ref[0, 0].astype(jnp.bfloat16)
    # q @ k^T without an explicit transpose: contract the last axes directly.
    scores = lax.dot_general(
        q, k, (((1,), (1,)), ((), ())), preferred_element_type=jnp.float32
    )
    if has_bias:
        scores = scores + bias_ref[0, 0]

    m = jnp.max(scores, axis=-1, keepdims=True)
    e = jnp.exp(scores - m)
    denom = jnp.sum(e, axis=-1, keepdims=True)
    # Exact reciprocal on the tiny (tq, 1) denominator so the *returned*
    # attention weights are true softmax rows (approx reciprocal not needed).
    attn = e * (1.0 / denom)
    attn_ref[0, 0] = attn

    ctx = jnp.dot(
        attn.astype(jnp.bfloat16),
        v_ref[0, 0].astype(jnp.bfloat16),
        preferred_element_type=jnp.float32,
    )
    # Fused output projection: accumulate this head's contribution to out.
    acc_ref[...] += jnp.dot(
        ctx.astype(jnp.bfloat16),
        ow_ref[0].astype(jnp.bfloat16),
        preferred_element_type=jnp.float32,
    )

    @pl.when(h == pl.num_programs(2) - 1)
    def _():
        out_ref[0] = (acc_ref[...] + ob_ref[...]).astype(out_ref.dtype)


def pallas_mha(q4, k4, v4, o_w3, o_b2, bias4, *, scale, tq_pref=256):
    """q4/k4/v4: (B, H, S, Dh); o_w3: (H, Dh, E); o_b2: (1, E)."""
    B, H, Sq, Dh = q4.shape
    Sk = k4.shape[2]
    E = o_w3.shape[2]
    tq = _pick_tile(Sq, tq_pref, 8)
    grid = (B, Sq // tq, H)

    in_specs = [
        pl.BlockSpec((1, 1, tq, Dh), lambda b, qi, h: (b, h, qi, 0)),
        pl.BlockSpec((1, 1, Sk, Dh), lambda b, qi, h: (b, h, 0, 0)),
        pl.BlockSpec((1, 1, Sk, Dh), lambda b, qi, h: (b, h, 0, 0)),
        pl.BlockSpec((1, Dh, E), lambda b, qi, h: (h, 0, 0)),
        pl.BlockSpec((1, E), lambda b, qi, h: (0, 0)),
    ]
    args = [q4, k4, v4, o_w3, o_b2]

    has_bias = bias4 is not None
    if has_bias:
        mb = bias4.shape[0] > 1  # mask varies over batch?
        mh = bias4.shape[1] > 1  # mask varies over heads?
        in_specs.append(
            pl.BlockSpec(
                (1, 1, tq, Sk),
                lambda b, qi, h, _mb=mb, _mh=mh: (
                    b if _mb else 0,
                    h if _mh else 0,
                    qi,
                    0,
                ),
            )
        )
        args.append(bias4)

    kern = functools.partial(_attn_kernel, scale=scale, has_bias=has_bias)
    attn, out = pl.pallas_call(
        kern,
        out_shape=(
            jax.ShapeDtypeStruct((B, H, Sq, Sk), jnp.float32),
            jax.ShapeDtypeStruct((B, Sq, E), jnp.float32),
        ),
        grid_spec=pltpu.PrefetchScalarGridSpec(
            num_scalar_prefetch=0,
            grid=grid,
            in_specs=in_specs,
            out_specs=(
                pl.BlockSpec((1, 1, tq, Sk), lambda b, qi, h: (b, h, qi, 0)),
                pl.BlockSpec((1, tq, E), lambda b, qi, h: (b, qi, 0)),
            ),
            scratch_shapes=[pltpu.VMEM((tq, E), jnp.float32)],
        ),
        compiler_params=pltpu.CompilerParams(
            dimension_semantics=("parallel", "parallel", "arbitrary"),
            vmem_limit_bytes=_VMEM_LIMIT,
        ),
    )(*args)
    return attn, out


# ----------------------------------------------------------------------------
# Parameters (PyTorch-Linear-style uniform init; weights stored (E_in, E_out))
# ----------------------------------------------------------------------------
def init_linear_params(key, e_in, e_out):
    kw, kb = jax.random.split(key)
    bound = 1.0 / math.sqrt(e_in)
    w = jax.random.uniform(kw, (e_in, e_out), jnp.float32, -bound, bound)
    b = jax.random.uniform(kb, (e_out,), jnp.float32, -bound, bound)
    return w, b


class NexusAttentionPallas:
    def __init__(self, embed_dim, num_heads, key, dropout=0.1):
        self.embed_dim = embed_dim
        self.num_heads = num_heads
        self.head_dim = embed_dim // num_heads
        self.dropout = dropout  # eval mode -> identity
        ks = jax.random.split(key, 4)
        self.q_w, self.q_b = init_linear_params(ks[0], embed_dim, embed_dim)
        self.k_w, self.k_b = init_linear_params(ks[1], embed_dim, embed_dim)
        self.v_w, self.v_b = init_linear_params(ks[2], embed_dim, embed_dim)
        self.o_w, self.o_b = init_linear_params(ks[3], embed_dim, embed_dim)
        # Fused QKV weights: one (E, 3E) matmul reads the activation once.
        self.qkv_w = jnp.concatenate([self.q_w, self.k_w, self.v_w], axis=1)
        self.qkv_b = jnp.concatenate([self.q_b, self.k_b, self.v_b], axis=0)
        # Output projection pre-split per head for the fused attention kernel.
        self.o_w3 = self.o_w.reshape(num_heads, self.head_dim, embed_dim)
        self.o_b2 = self.o_b.reshape(1, embed_dim)

    def __call__(self, query, key, value, mask=None):
        B, Sq, E = query.shape
        H, Dh = self.num_heads, self.head_dim
        scale = 1.0 / math.sqrt(Dh)

        if (query is key) and (key is value):
            # Self-attention: fused QKV projection, one pass over the input.
            qkv = pallas_linear(query.reshape(B * Sq, E), self.qkv_w, self.qkv_b)
            qkv = qkv.reshape(B, Sq, 3, H, Dh).transpose(2, 0, 3, 1, 4)
            q4, k4, v4 = qkv[0], qkv[1], qkv[2]
        else:
            Sk = key.shape[1]
            q = pallas_linear(query.reshape(B * Sq, E), self.q_w, self.q_b)
            k = pallas_linear(key.reshape(B * Sk, E), self.k_w, self.k_b)
            v = pallas_linear(value.reshape(B * Sk, E), self.v_w, self.v_b)
            q4 = q.reshape(B, Sq, H, Dh).transpose(0, 2, 1, 3)
            k4 = k.reshape(B, Sk, H, Dh).transpose(0, 2, 1, 3)
            v4 = v.reshape(B, Sk, H, Dh).transpose(0, 2, 1, 3)

        bias4 = None
        if mask is not None:
            # torch masked_fill(mask == 0, -1e9) as an additive bias.
            Sk_full = k4.shape[2]
            bias = jnp.where(mask == 0, jnp.float32(-1e9), jnp.float32(0.0))
            if bias.ndim == 2:          # (Sq, Sk)
                bias = bias[None, None]
            elif bias.ndim == 3:        # (B, Sq, Sk)
                bias = bias[:, None]
            bias4 = jnp.broadcast_to(
                bias, (bias.shape[0], bias.shape[1], Sq, Sk_full)
            ).astype(jnp.float32)

        attn, out = pallas_mha(q4, k4, v4, self.o_w3, self.o_b2, bias4,
                               scale=scale)
        return out, attn


# ----------------------------------------------------------------------------
# Pure-JAX reference (f32 everywhere)
# ----------------------------------------------------------------------------
def reference_forward(mod, query, key, value, mask=None):
    B, Sq, E = query.shape
    H, Dh = mod.num_heads, mod.head_dim
    q = query @ mod.q_w + mod.q_b
    k = key @ mod.k_w + mod.k_b
    v = value @ mod.v_w + mod.v_b
    qh = q.reshape(B, Sq, H, Dh).transpose(0, 2, 1, 3)
    kh = k.reshape(B, -1, H, Dh).transpose(0, 2, 1, 3)
    vh = v.reshape(B, -1, H, Dh).transpose(0, 2, 1, 3)
    scores = jnp.einsum("bhqd,bhkd->bhqk", qh, kh) / math.sqrt(Dh)
    if mask is not None:
        m = mask
        if m.ndim == 2:
            m = m[None, None]
        elif m.ndim == 3:
            m = m[:, None]
        scores = jnp.where(m == 0, jnp.float32(-1e9), scores)
    attn = jax.nn.softmax(scores, axis=-1)
    ctx = jnp.einsum("bhqk,bhkd->bhqd", attn, vh)
    ctx = ctx.transpose(0, 2, 1, 3).reshape(B, Sq, E)
    out = ctx @ mod.o_w + mod.o_b
    return out, attn


if __name__ == "__main__":
    # small shapes: batch=2, seq=8, embed_dim=32, num_heads=4 (head_dim=8)
    B, S, E, H = 2, 8, 32, 4
    root = jax.random.PRNGKey(0)
    k_params, k_x, k_q, k_k, k_v = jax.random.split(root, 5)

    mod = NexusAttentionPallas(E, H, k_params)

    # MXU operands are bf16 (f32 accumulation) -> relaxed tolerance vs f32 ref.
    TOL = 2e-2

    # --- self-attention (fused QKV projection + fused output projection) ---
    x = jax.random.normal(k_x, (B, S, E), jnp.float32)
    out, attn = mod(x, x, x)
    out = jax.block_until_ready(out)
    attn = jax.block_until_ready(attn)
    ref_out, ref_attn = reference_forward(mod, x, x, x)
    assert out.shape == (B, S, E)
    assert attn.shape == (B, H, S, S)
    assert jnp.allclose(out, ref_out, atol=TOL, rtol=TOL)
    assert jnp.allclose(attn, ref_attn, atol=TOL, rtol=TOL)

    # --- cross-attention (separate projection path) ---
    query = jax.random.normal(k_q, (B, S, E), jnp.float32)
    key_t = jax.random.normal(k_k, (B, S, E), jnp.float32)
    value = jax.random.normal(k_v, (B, S, E), jnp.float32)
    out2, attn2 = mod(query, key_t, value)
    out2 = jax.block_until_ready(out2)
    ref_out2, ref_attn2 = reference_forward(mod, query, key_t, value)
    assert jnp.allclose(out2, ref_out2, atol=TOL, rtol=TOL)
    assert jnp.allclose(attn2, ref_attn2, atol=TOL, rtol=TOL)

    # --- self-attention with a boolean (causal) mask ---
    causal = jnp.tril(jnp.ones((S, S), jnp.int32))
    out3, attn3 = mod(x, x, x, mask=causal)
    out3 = jax.block_until_ready(out3)
    ref_out3, ref_attn3 = reference_forward(mod, x, x, x, mask=causal)
    assert jnp.allclose(out3, ref_out3, atol=TOL, rtol=TOL)
    assert jnp.allclose(attn3, ref_attn3, atol=TOL, rtol=TOL)

    print("KERNEL_OK")
</pallas_src>

<mosaic_0001>
module attributes {stable_mosaic.version = 11 : i64} {
  func.func @_linear_kernel(%arg0: i32, %arg1: i32, %arg2: i32, %arg3: memref<16x32xf32, #tpu.memory_space<vmem>>, %arg4: memref<32x96xf32, #tpu.memory_space<vmem>>, %arg5: memref<1x96xf32, #tpu.memory_space<vmem>>, %arg6: memref<16x96xf32, #tpu.memory_space<vmem>>, %arg7: memref<16x96xf32, #tpu.memory_space<vmem>>) attributes {dimension_semantics = [#tpu.dimension_semantics<parallel>, #tpu.dimension_semantics<parallel>, #tpu.dimension_semantics<arbitrary>], iteration_bounds = array<i64: 1, 1, 1>, scalar_prefetch = 0 : i64, scratch_operands = 1 : i64, tpu.core_type = #tpu.core_type<tc>, window_params = [{transform_indices = @transform_0, window_bounds = array<i64: 16, 32>}, {transform_indices = @transform_1, window_bounds = array<i64: 32, 96>}, {transform_indices = @transform_2, window_bounds = array<i64: 1, 96>}, {transform_indices = @transform_3, window_bounds = array<i64: 16, 96>}]} {
    %c0_i32 = arith.constant 0 : i32
    %0 = arith.cmpi eq, %arg2, %c0_i32 : i32
    %1 = arith.extui %0 : i1 to i32
    %c0_i32_0 = arith.constant 0 : i32
    %2 = arith.cmpi ne, %1, %c0_i32_0 : i32
    scf.if %2 {
      %cst_10 = arith.constant 0.000000e+00 : f32
      %14 = vector.broadcast %cst_10 : f32 to vector<16x96xf32>
      %c0_11 = arith.constant 0 : index
      %c0_12 = arith.constant 0 : index
      %15 = vector.load %arg7[%c0_11, %c0_12] : memref<16x96xf32, #tpu.memory_space<vmem>>, vector<16x96xf32>
      tpu.vector_store %arg7[%c0_11, %c0_12], %14 {strides = array<i32>} : memref<16x96xf32, #tpu.memory_space<vmem>>, vector<16x96xf32>,
    } else {
    }
    %c0 = arith.constant 0 : index
    %c0_1 = arith.constant 0 : index
    %3 = vector.load %arg7[%c0, %c0_1] : memref<16x96xf32, #tpu.memory_space<vmem>>, vector<16x96xf32>
    %c0_2 = arith.constant 0 : index
    %c0_3 = arith.constant 0 : index
    %4 = vector.load %arg3[%c0_2, %c0_3] : memref<16x32xf32, #tpu.memory_space<vmem>>, vector<16x32xf32>
    %5 = arith.truncf %4 : vector<16x32xf32> to vector<16x32xbf16>
    %c0_4 = arith.constant 0 : index
    %c0_5 = arith.constant 0 : index
    %6 = vector.load %arg4[%c0_4, %c0_5] : memref<32x96xf32, #tpu.memory_space<vmem>>, vector<32x96xf32>
    %7 = arith.truncf %6 : vector<32x96xf32> to vector<32x96xbf16>
    %cst = arith.constant dense<0.000000e+00> : vector<16x96xf32>
    %8 = tpu.matmul %5, %7, %cst {dimension_numbers = #tpu.dot_dimension_numbers<[1], [0], [0], [1], [0, 0, 1, 1], [], []>} : vector<16x32xbf16>, vector<32x96xbf16>, vector<16x96xf32> -> vector<16x96xf32>
    %9 = arith.addf %3, %8 : vector<16x96xf32>
    %c0_6 = arith.constant 0 : index
    %c0_7 = arith.constant 0 : index
    %10 = vector.load %arg7[%c0_6, %c0_7] : memref<16x96xf32, #tpu.memory_space<vmem>>, vector<16x96xf32>
    tpu.vector_store %arg7[%c0_6, %c0_7], %9 {strides = array<i32>} : memref<16x96xf32, #tpu.memory_space<vmem>>, vector<16x96xf32>,
    %c0_i32_8 = arith.constant 0 : i32
    %11 = arith.cmpi eq, %arg2, %c0_i32_8 : i32
    %12 = arith.extui %11 : i1 to i32
    %c0_i32_9 = arith.constant 0 : i32
    %13 = arith.cmpi ne, %12, %c0_i32_9 : i32
    scf.if %13 {
      %c0_10 = arith.constant 0 : index
      %c0_11 = arith.constant 0 : index
      %14 = vector.load %arg7[%c0_10, %c0_11] : memref<16x96xf32, #tpu.memory_space<vmem>>, vector<16x96xf32>
      %c0_12 = arith.constant 0 : index
      %c0_13 = arith.constant 0 : index
      %15 = vector.load %arg5[%c0_12, %c0_13] : memref<1x96xf32, #tpu.memory_space<vmem>>, vector<1x96xf32>
      %16 = vector.broadcast %15 : vector<1x96xf32> to vector<16x96xf32>
      %17 = arith.addf %14, %16 : vector<16x96xf32>
      %c0_14 = arith.constant 0 : index
      %c0_15 = arith.constant 0 : index
      %18 = vector.load %arg6[%c0_14, %c0_15] : memref<16x96xf32, #tpu.memory_space<vmem>>, vector<16x96xf32>
      tpu.vector_store %arg6[%c0_14, %c0_15], %17 {strides = array<i32>} : memref<16x96xf32, #tpu.memory_space<vmem>>, vector<16x96xf32>,
    } else {
    }
    return
  }
  func.func @transform_0(%arg0: i32, %arg1: i32, %arg2: i32) -> (i32, i32) {
    %c0_i32 = arith.constant 0 : i32
    return %arg0, %arg2 : i32, i32
  }
  func.func @transform_1(%arg0: i32, %arg1: i32, %arg2: i32) -> (i32, i32) {
    %c0_i32 = arith.constant 0 : i32
    return %arg2, %arg1 : i32, i32
  }
  func.func @transform_2(%arg0: i32, %arg1: i32, %arg2: i32) -> (i32, i32) {
    %c0_i32 = arith.constant 0 : i32
    %c0_i32_0 = arith.constant 0 : i32
    return %c0_i32, %arg1 : i32, i32
  }
  func.func @transform_3(%arg0: i32, %arg1: i32, %arg2: i32) -> (i32, i32) {
    %c0_i32 = arith.constant 0 : i32
    return %arg0, %arg1 : i32, i32
  }
}

</mosaic_0001>

<llo_original>
// kernel: tpu_custom_call.1
$region0: #{tpu_custom_call.1}
  #allocation0 [shape = 'u32[]', space=smem, size = 0x4, offset = 0x4, fixed_abs, tag = 'smem constant byte address 0x4 - core index']
  #allocation1 [shape = 'u32[144,128]{1,0:T(1,128)}', space=vmem, size = 0x12000, scoped, tag = 'internal scratch']
  #allocation2 [shape = 'f32[16,96]{1,0:T(8,128)}', space=vmem, size = 0x2000, scoped, tag = 'scratch operand']
  %s0 = inlined_call_operand.hbm [shape: f32[16,32], index: 0, kind: input, shape index: {}]
  %s1 = inlined_call_operand.hbm [shape: f32[32,96], index: 1, kind: input, shape index: {}]
  %s2 = inlined_call_operand.vmem [shape: f32[1,96], index: 2, kind: input, shape index: {}]
  %s3 = inlined_call_operand.hbm [shape: f32[16,96], index: 3, kind: output, shape index: {}]
  %s4 = sld [smem:[#allocation0]]
  $region38: #{tpu_custom_call.1} parent=0
    _
  %s6 = ssub.s32 1, %s4
  %s7 = scalar_select 0, %s6, %s4
  $region1: #{tpu_custom_call.1} parent=0
    #allocation3 [shape = 'u8[8192]{0}', space=vmem, size = 0x2000, scoped, tag = 'input window, operand 0, single buffered']
    #allocation4 [shape = 's32[1]{0}', space=sflag, size = 0x4, scoped, tag = 'scoped memory for tpu_custom_call.1']
    #allocation5 [shape = 's32[1]{0}', space=sflag, size = 0x4, scoped, tag = 'scoped memory for tpu_custom_call.1']
    #allocation6 [shape = 'u8[16384]{0}', space=vmem, size = 0x4000, scoped, tag = 'input window, operand 1, single buffered']
    #allocation7 [shape = 's32[1]{0}', space=sflag, size = 0x4, scoped, tag = 'scoped memory for tpu_custom_call.1']
    #allocation8 [shape = 'u8[8192]{0}', space=vmem, size = 0x2000, scoped, tag = 'output window, operand 0, single buffered']
    %8 = vsyncpa [#allocation4], 0
    %9 = vsyncpa [#allocation7], 0
    %10 = vsyncpa [#allocation5], 0
    // Predicated region
    $region2: #{tpu_custom_call.1} parent=1 // pred_check
      _
    $region3: #{tpu_custom_call.1} parent=1 // pred_check_branch
      %12 = sbr.rel (0) target = $region5
    $region4: #{tpu_custom_call.1} parent=1 // pred_region
      %s14 = ssub.s32 256, 256
      %15 = vsyncadd [#allocation4], %s14
      %s16 = sshll.u32 [#allocation3], 4
      %s17 = int_to_ptr.vmem [resolvable:$true] %s16
      %22 = dma.hbm_to_vmem [thread:$0]  %s0, 256, %s17, [#allocation4], 128, 128, 8
    $region5: #{tpu_custom_call.1} parent=1 // pred_fallthru
      _
    // Predicated region
    $region6: #{tpu_custom_call.1} parent=1 // pred_check
      _
    $region7: #{tpu_custom_call.1} parent=1 // pred_check_branch
      %24 = sbr.rel (0) target = $region9
    $region8: #{tpu_custom_call.1} parent=1 // pred_region
      %s26 = ssub.s32 512, 512
      %27 = vsyncadd [#allocation7], %s26
      %s28 = sshll.u32 [#allocation6], 4
      %s29 = int_to_ptr.vmem [resolvable:$true] %s28
      %34 = dma.hbm_to_vmem [thread:$0]  %s1, 512, %s29, [#allocation7], 128, 128, 8
    $region9: #{tpu_custom_call.1} parent=1 // pred_fallthru
      _
    // Predicated region
    $region10: #{tpu_custom_call.1} parent=1 // pred_check
      _
    $region11: #{tpu_custom_call.1} parent=1 // pred_check_branch
      %36 = sbr.rel (0) target = $region13
    $region12: #{tpu_custom_call.1} parent=1 // pred_region
      _
    $region13: #{tpu_custom_call.1} parent=1 // pred_fallthru
      _
    // Predicated region
    $region14: #{tpu_custom_call.1} parent=1 // pred_check
      _
    $region15: #{tpu_custom_call.1} parent=1 // pred_check_branch
      %38 = sbr.rel (0) target = $region17
    $region16: #{tpu_custom_call.1} parent=1 // pred_region
      %39 = dma.done [#allocation4], 256
    $region17: #{tpu_custom_call.1} parent=1 // pred_fallthru
      _
    // Predicated region
    $region18: #{tpu_custom_call.1} parent=1 // pred_check
      _
    $region19: #{tpu_custom_call.1} parent=1 // pred_check_branch
      %41 = sbr.rel (0) target = $region21
    $region20: #{tpu_custom_call.1} parent=1 // pred_region
      %42 = dma.done [#allocation7], 512
    $region21: #{tpu_custom_call.1} parent=1 // pred_fallthru
      _
    %p44 = scmp.eq.s32.totalorder 0, 0
    // Predicated region
    $region22: #{tpu_custom_call.1} parent=1 // pred_check
      %p45 = pneg %p44
    $region23: #{tpu_custom_call.1} parent=1 // pred_check_branch
      %47 = sbr.rel (%p45) target = $region25
    $region24: #{tpu_custom_call.1} parent=1 // pred_region
      %vm48 = vcmask 785408
      %49 = vst.msk [vmem:[#allocation2] sm:$0xff] %vm48, 0.0
      %50 = vst.msk [vmem:[#allocation2 + $0x8] sm:$0xff] %vm48, 0.0
    $region25: #{tpu_custom_call.1} parent=1 // pred_fallthru
      _
    %v51 = vld [vmem:[#allocation2] sm:$0xff]
    %v52 = vld [vmem:[#allocation2 + $0x8] sm:$0xff]
    %v53 = vld [vmem:[#allocation3] sm:$0xff]
    %v54 = vld [vmem:[#allocation3 + $0x8] sm:$0xff]
    %v55 = vpack.c.bf16 %v54, %v53
    %v56 = vld [vmem:[#allocation6] sm:$0xff]
    %v57 = vld [vmem:[#allocation6 + $0x8] sm:$0xff]
    %v58 = vld [vmem:[#allocation6 + $0x10] sm:$0xff]
    %v59 = vld [vmem:[#allocation6 + $0x18] sm:$0xff]
    %v60 = vpack.c.bf16 %v57, %v56
    %v61 = vpack.c.bf16 %v59, %v58
    %vm62 = vcmask 261120
    %v64 = vsel %vm62, %v55, 0
    %66 = vmatprep.subr.bf16.mxu0 0
    %67 = vmatpush1.bf16.msra.mxu0 %v60
    %68 = vmatprep.subr.bf16.mxu0 0
    %69 = vmatpush1.bf16.msra.mxu0 %v61
    %70 = vmatprep.subr.bf16.mxu0 0
    %71 = vmatpush1.bf16.msra.mxu0 0
    %72 = vmatprep.subr.bf16.mxu0 0
    %73 = vmatpush1.bf16.msra.mxu0 0
    %74 = vmatprep.subr.bf16.mxu0 0
    %75 = vmatpush1.bf16.msra.mxu0 0
    %76 = vmatprep.subr.bf16.mxu0 0
    %77 = vmatpush1.bf16.msra.mxu0 0
    %78 = vmatprep.subr.bf16.mxu0 0
    %79 = vmatpush1.bf16.msra.mxu0 0
    %80 = vmatprep.subr.bf16.mxu0 0
    %81 = vmatpush1.bf16.msra.mxu0 0
    %82 = vmatprep.subr.bf16.mxu0 0
    %83 = vmatpush1.bf16.msra.mxu0 0
    %84 = vmatprep.subr.bf16.mxu0 0
    %85 = vmatpush1.bf16.msra.mxu0 0
    %86 = vmatprep.subr.bf16.mxu0 0
    %87 = vmatpush1.bf16.msra.mxu0 0
    %88 = vmatprep.subr.bf16.mxu0 0
    %89 = vmatpush1.bf16.msra.mxu0 0
    %90 = vmatprep.subr.bf16.mxu0 0
    %91 = vmatpush1.bf16.msra.mxu0 0
    %92 = vmatprep.subr.bf16.mxu0 0
    %93 = vmatpush1.bf16.msra.mxu0 0
    %94 = vmatprep.subr.bf16.mxu0 0
    %95 = vmatpush1.bf16.msra.mxu0 0
    %96 = vmatprep.subr.bf16.mxu0 0
    %97 = vmatpush1.bf16.msra.mxu0 0
    %98 = vmatprep.mubr.bf16.mxu0 0
    %99 = vmatmul.mubr.bf16.gmra.mrb[0].mxu0 %v64
    %v100 = vpop.f32.mrb[0].mxu0
    %v101 = vadd.f32 0.0, %v100
    %v102 = vpop.f32.mrb[0].mxu0
    %v103 = vpop.f32.mrb[0].mxu0
    %v104 = vadd.f32 0.0, %v103
    %v105 = vpop.f32.mrb[0].mxu0
    %106 = vdwg.mxu0
    %v107 = vadd.f32 %v51, %v101
    %v108 = vadd.f32 %v52, %v104
    %vm109 = vcmask 785408
    %110 = vst.msk [vmem:[#allocation2] sm:$0xff] %vm109, %v107
    %111 = vst.msk [vmem:[#allocation2 + $0x8] sm:$0xff] %vm109, %v108
    // Predicated region
    $region26: #{tpu_custom_call.1} parent=1 // pred_check
      %p112 = pneg %p44
    $region27: #{tpu_custom_call.1} parent=1 // pred_check_branch
      %114 = sbr.rel (%p112) target = $region29
    $region28: #{tpu_custom_call.1} parent=1 // pred_region
      %v115 = vld [vmem:[#allocation2] sm:$0xff]
      %v116 = vld [vmem:[#allocation2 + $0x8] sm:$0xff]
      %v117 = vld [vmem:[%s2] sm:$0x1]
      %v119 = vlaneseq
      %v120 = vshrl.u32 %v119, 7
      %v121 = vsub.s32 0, %v120
      %v122 = vrot.slane %v117, %v121
      %v124 = vadd.f32 %v115, %v122
      %v125 = vadd.f32 %v116, %v122
      %126 = vst.msk [vmem:[#allocation8] sm:$0xff] %vm109, %v124
      %127 = vst.msk [vmem:[#allocation8 + $0x8] sm:$0xff] %vm109, %v125
    $region29: #{tpu_custom_call.1} parent=1 // pred_fallthru
      _
    // Predicated region
    $region30: #{tpu_custom_call.1} parent=1 // pred_check
      _
    $region31: #{tpu_custom_call.1} parent=1 // pred_check_branch
      %129 = sbr.rel (0) target = $region33
    $region32: #{tpu_custom_call.1} parent=1 // pred_region
      %s131 = ssub.s32 256, 256
      %132 = vsyncadd [#allocation5], %s131
      %s133 = sshll.u32 [#allocation8], 4
      %s134 = int_to_ptr.vmem [resolvable:$true] %s133
      %139 = dma.vmem_to_hbm [thread:$0]  %s134, 256, %s3, [#allocation5], 128, 128, 8
    $region33: #{tpu_custom_call.1} parent=1 // pred_fallthru
      _
    // Predicated region
    $region34: #{tpu_custom_call.1} parent=1 // pred_check
      _
    $region35: #{tpu_custom_call.1} parent=1 // pred_check_branch
      %141 = sbr.rel (0) target = $region37
    $region36: #{tpu_custom_call.1} parent=1 // pred_region
      %142 = dma.done [#allocation5], 256
    $region37: #{tpu_custom_call.1} parent=1 // pred_fallthru
      _
    %143 = vsyncpa [#allocation4], 1
    %144 = vsyncpa [#allocation7], 1
    %145 = vsyncpa [#allocation5], 1

</llo_original>
